<compile_context>
chip_gen: v5e
topology: v5e:2x2
jax: 0.10.0
libtpu: 0.0.40
codegen_flags: <defaults>
</compile_context>

<pallas_src>
import functools
import math

import jax
import jax.numpy as jnp
from jax.experimental import pallas as pl
from jax.experimental.pallas import tpu as pltpu


def _round_up(x, m):
    return ((x + m - 1) // m) * m


@functools.lru_cache(maxsize=1)
def _chip_vmem_bytes():
    try:
        return int(pltpu.get_tpu_info().vmem_capacity_bytes)
    except Exception:
        return 128 * 1024 * 1024          # v5e / v6e default


_FUSED_MAX_NODES = 512                    # single-pallas_call fast path below this size


def _kernel_config(n_nodes):
    """Chip-aware tile sizes. v7x has 64 MiB VMEM/TC -> smaller row tile & limit."""
    small_vmem = _chip_vmem_bytes() <= 96 * 1024 * 1024   # v7x
    if n_nodes <= _FUSED_MAX_NODES:
        np_ = max(16, _round_up(n_nodes, 16))
        return dict(fused=True, Np=np_, TM=np_, TK=np_, vmem_limit=32 * 1024 * 1024)
    tm = 256 if small_vmem else 512       # node row tile
    tk = 512                              # contraction tile (lcm(TM, TK) = 512)
    np_ = _round_up(n_nodes, 512)
    return dict(fused=False, Np=np_, TM=tm, TK=tk,
                vmem_limit=(40 if small_vmem else 80) * 1024 * 1024)


# --------------------------------------------------------------------------------------
# Kernel 1: fused 2-layer MLP.  X2 = [x_p | x_n | 0-pad]   (row-tiled over nodes)
# --------------------------------------------------------------------------------------
def _mlp_kernel(feat_ref, w0_ref, w1_ref, x2_ref):
    h = jnp.dot(feat_ref[...], w0_ref[...], preferred_element_type=jnp.float32)
    h = jnp.maximum(h, 0.0)  # ReLU in f32 (VPU)
    # TODO(synk): dropout is identity (inference mode); training-mode masks not implemented.
    x2 = jnp.dot(h.astype(jnp.bfloat16), w1_ref[...], preferred_element_type=jnp.float32)
    x2_ref[...] = x2.astype(x2_ref.dtype)


# --------------------------------------------------------------------------------------
# Kernel 2: hop-1 propagation, K-tiled over the contraction axis.  Produces lane-swizzled
#   W2a = [A_p x_p | A_n x_n | 0]   and   W2b = [A_n x_p | A_p x_n | 0]
# (both the hop-1 contribution to z and the RHS of the hop-2 matmuls).
# --------------------------------------------------------------------------------------
def _hop1_kernel(a_p_ref, a_n_ref, x2_ref, w2a_ref, w2b_ref, accp_ref, accn_ref, *, hidden):
    f32 = jnp.float32
    k = pl.program_id(1)

    @pl.when(k == 0)
    def _():
        accp_ref[...] = jnp.zeros_like(accp_ref)
        accn_ref[...] = jnp.zeros_like(accn_ref)

    x2 = x2_ref[...]                                                      # (TK, P) bf16
    accp_ref[...] += jnp.dot(a_p_ref[...], x2, preferred_element_type=f32)  # [Ap x_p | Ap x_n]
    accn_ref[...] += jnp.dot(a_n_ref[...], x2, preferred_element_type=f32)  # [An x_p | An x_n]

    @pl.when(k == pl.num_programs(1) - 1)
    def _():
        lane = jax.lax.broadcasted_iota(jnp.int32, (1, accp_ref.shape[1]), 1)
        is_p = lane < hidden                                              # VPU lane select
        y1p, y1n = accp_ref[...], accn_ref[...]
        w2a_ref[...] = jnp.where(is_p, y1p, y1n).astype(w2a_ref.dtype)    # [Ap x_p | An x_n]
        w2b_ref[...] = jnp.where(is_p, y1n, y1p).astype(w2b_ref.dtype)    # [An x_p | Ap x_n]


# --------------------------------------------------------------------------------------
# Kernel 3: hop-2 (K-tiled) + lane-coefficient combine + classifier head + softmax /
#           log-softmax / L2-normalize.  All stores are lane-dense (128-wide).
# --------------------------------------------------------------------------------------
def _hop2_out_kernel(a_p_ref, a_n_ref, w2a_k_ref, w2b_k_ref, y1_row_ref, x2_row_ref,
                     coef_ref, wprob_ref, bias_ref,
                     znorm_ref, logprob_ref, prob_ref,
                     acc2p_ref, acc2n_ref):
    f32 = jnp.float32
    k = pl.program_id(1)

    @pl.when(k == 0)
    def _():
        acc2p_ref[...] = jnp.zeros_like(acc2p_ref)
        acc2n_ref[...] = jnp.zeros_like(acc2n_ref)

    acc2p_ref[...] += jnp.dot(a_p_ref[...], w2a_k_ref[...], preferred_element_type=f32)
    acc2n_ref[...] += jnp.dot(a_n_ref[...], w2b_k_ref[...], preferred_element_type=f32)

    @pl.when(k == pl.num_programs(1) - 1)
    def _():
        x2_t = x2_row_ref[...].astype(f32)      # [x_p        | x_n       ]  (row tile)
        y1_t = y1_row_ref[...].astype(f32)      # [Ap x_p     | An x_n    ]  (row tile)
        y2p = acc2p_ref[...]                    # [Ap^2 x_p   | Ap An x_n ]
        y2n = acc2n_ref[...]                    # [An^2 x_p   | An Ap x_n ]

        # z = [feat_p | feat_n] assembled with per-lane hop coefficients (no concat).
        z = (coef_ref[0:1, :] * x2_t + coef_ref[1:2, :] * y1_t
             + coef_ref[2:3, :] * y2p + coef_ref[3:4, :] * y2n)

        # bf16 classifier head (MXU); padded class lanes carry a -1e30 bias so they
        # vanish under softmax.  Softmax / log / normalize stay f32.
        logits = jnp.dot(z.astype(jnp.bfloat16), wprob_ref[...],
                         preferred_element_type=f32) + bias_ref[...]
        m = jnp.max(logits, axis=1, keepdims=True)
        shifted = logits - m
        e = jnp.exp(shifted)
        s = jnp.sum(e, axis=1, keepdims=True)
        prob_ref[...] = e / s                   # exact divide: prob rows sum to 1
        logprob_ref[...] = shifted - jnp.log(s)

        # F.normalize: L2 with eps=1e-12 clamp, via rsqrt (EUP slot; padded lanes are 0).
        ss = jnp.sum(z * z, axis=1, keepdims=True)
        znorm_ref[...] = z * jax.lax.rsqrt(jnp.maximum(ss, 1e-24))


# --------------------------------------------------------------------------------------
# Fused fast path for small graphs: MLP -> hop-1 -> hop-2 -> head -> softmax/normalize
# in one pallas_call (no HBM round-trips for X2/W2a/W2b, one launch).
# --------------------------------------------------------------------------------------
def _fused_kernel(a_p_ref, a_n_ref, feat_ref, w0_ref, w1_ref,
                  coef_ref, wprob_ref, bias_ref,
                  znorm_ref, logprob_ref, prob_ref, *, hidden):
    f32, bf16 = jnp.float32, jnp.bfloat16
    h = jnp.maximum(jnp.dot(feat_ref[...], w0_ref[...], preferred_element_type=f32), 0.0)
    # TODO(synk): dropout is identity (inference mode); training-mode masks not implemented.
    x2 = jnp.dot(h.astype(bf16), w1_ref[...], preferred_element_type=f32)    # [x_p | x_n]

    a_p, a_n, x2b = a_p_ref[...], a_n_ref[...], x2.astype(bf16)
    y1p = jnp.dot(a_p, x2b, preferred_element_type=f32)                      # [Ap x_p | Ap x_n]
    y1n = jnp.dot(a_n, x2b, preferred_element_type=f32)                      # [An x_p | An x_n]
    lane = jax.lax.broadcasted_iota(jnp.int32, (1, x2.shape[1]), 1)
    is_p = lane < hidden
    w2a = jnp.where(is_p, y1p, y1n)                                          # [Ap x_p | An x_n]
    w2b = jnp.where(is_p, y1n, y1p)                                          # [An x_p | Ap x_n]
    y2p = jnp.dot(a_p, w2a.astype(bf16), preferred_element_type=f32)         # [Ap^2 x_p | Ap An x_n]
    y2n = jnp.dot(a_n, w2b.astype(bf16), preferred_element_type=f32)         # [An^2 x_p | An Ap x_n]

    z = (coef_ref[0:1, :] * x2 + coef_ref[1:2, :] * w2a
         + coef_ref[2:3, :] * y2p + coef_ref[3:4, :] * y2n)

    logits = jnp.dot(z.astype(bf16), wprob_ref[...], preferred_element_type=f32) + bias_ref[...]
    m = jnp.max(logits, axis=1, keepdims=True)
    shifted = logits - m
    e = jnp.exp(shifted)
    s = jnp.sum(e, axis=1, keepdims=True)
    prob_ref[...] = e / s
    logprob_ref[...] = shifted - jnp.log(s)

    ss = jnp.sum(z * z, axis=1, keepdims=True)
    znorm_ref[...] = z * jax.lax.rsqrt(jnp.maximum(ss, 1e-24))


# --------------------------------------------------------------------------------------
# Wrapper
# --------------------------------------------------------------------------------------
def prepare_adjacency(A_p, A_n):
    """Pad to the kernel tile multiple and cast to bf16 once.

    The result depends only on the graph: cache it across repeated forward calls to
    avoid re-reading/re-writing ~6*N^2 bytes of HBM per call.
    """
    N = A_p.shape[0]
    cfg = _kernel_config(N)
    pad = cfg["Np"] - N
    bf16 = jnp.bfloat16
    A_p_b, A_n_b = A_p.astype(bf16), A_n.astype(bf16)
    if pad:
        A_p_b = jnp.pad(A_p_b, ((0, pad), (0, pad)))
        A_n_b = jnp.pad(A_n_b, ((0, pad), (0, pad)))
    return A_p_b, A_n_b


def balance_theory_forward(A_p, A_n, features, params, prepared_adj=None):
    f32, bf16 = jnp.float32, jnp.bfloat16
    N, F = features.shape
    H = params["w_p1"].shape[1]
    C = params["W_prob"].shape[1]

    cfg = _kernel_config(N)
    Np, TM, TK = cfg["Np"], cfg["TM"], cfg["TK"]
    pad = Np - N

    P = max(128, _round_up(2 * H, 128))       # lane-padded embedding width
    CP = max(128, _round_up(C, 128))          # lane-padded class width

    if prepared_adj is None:
        A_p_b, A_n_b = prepare_adjacency(A_p, A_n)
    else:
        A_p_b, A_n_b = prepared_adj           # pre-converted (cached) bf16 adjacency
    feats_b = features.astype(bf16)
    if pad:
        feats_b = jnp.pad(feats_b, ((0, pad), (0, 0)))

    # ---- wrapper-side packing (pure layout; padded lanes / rows are exact zeros) ----
    w0_cat = (jnp.zeros((F, P), f32)
              .at[:, :H].set(params["w_p0"])
              .at[:, H:2 * H].set(params["w_n0"])).astype(bf16)
    w1_blk = (jnp.zeros((P, P), f32)
              .at[:H, :H].set(params["w_p1"])
              .at[H:2 * H, H:2 * H].set(params["w_n1"])).astype(bf16)

    lane = jnp.arange(P)
    in_p, in_n = lane < H, (lane >= H) & (lane < 2 * H)
    w_p, w_n = params["w_p"].reshape(-1), params["w_n"].reshape(-1)

    def lane_coef(cp, cn):
        return jnp.where(in_p, cp, jnp.where(in_n, cn, 0.0))

    coefs = jnp.stack([lane_coef(w_p[0], 0.0),      # x_p        | ----
                       lane_coef(w_p[1], w_n[0]),   # Ap x_p     | An x_n
                       lane_coef(w_p[2], w_n[1]),   # Ap^2 x_p   | Ap An x_n
                       lane_coef(w_p[3], w_n[2])],  # An^2 x_p   | An Ap x_n
                      axis=0).astype(f32)                                   # (4, P)

    wprob_pad = (jnp.zeros((P, CP), f32)
                 .at[:2 * H, :C].set(params["W_prob"])).astype(bf16)        # bf16 head
    bias_pad = jnp.full((1, CP), -1e30, f32).at[0, :C].set(params["bias"].reshape(-1))

    if cfg["fused"]:
        # ---- small-N fast path: everything in one pallas_call ----
        z_norm_p, logprob_p, prob_p = pl.pallas_call(
            functools.partial(_fused_kernel, hidden=H),
            out_shape=(jax.ShapeDtypeStruct((Np, P), f32),
                       jax.ShapeDtypeStruct((Np, CP), f32),
                       jax.ShapeDtypeStruct((Np, CP), f32)),
            grid=(1,),
            in_specs=[pl.BlockSpec((Np, Np), lambda i: (0, 0)),
                      pl.BlockSpec((Np, Np), lambda i: (0, 0)),
                      pl.BlockSpec((Np, F), lambda i: (0, 0)),
                      pl.BlockSpec((F, P), lambda i: (0, 0)),
                      pl.BlockSpec((P, P), lambda i: (0, 0)),
                      pl.BlockSpec((4, P), lambda i: (0, 0)),
                      pl.BlockSpec((P, CP), lambda i: (0, 0)),
                      pl.BlockSpec((1, CP), lambda i: (0, 0))],
            out_specs=(pl.BlockSpec((Np, P), lambda i: (0, 0)),
                       pl.BlockSpec((Np, CP), lambda i: (0, 0)),
                       pl.BlockSpec((Np, CP), lambda i: (0, 0))),
            compiler_params=pltpu.CompilerParams(
                dimension_semantics=("arbitrary",),
                vmem_limit_bytes=cfg["vmem_limit"]),
        )(A_p_b, A_n_b, feats_b, w0_cat, w1_blk, coefs, wprob_pad, bias_pad)
    else:
        n_m, n_k = Np // TM, Np // TK
        cparams_1d = pltpu.CompilerParams(dimension_semantics=("parallel",),
                                          vmem_limit_bytes=cfg["vmem_limit"])
        cparams_2d = pltpu.CompilerParams(dimension_semantics=("parallel", "arbitrary"),
                                          vmem_limit_bytes=cfg["vmem_limit"])

        # ---- call 1: fused MLP -> X2 = [x_p | x_n | 0] (bf16), row-tiled ----
        x2 = pl.pallas_call(
            _mlp_kernel,
            out_shape=jax.ShapeDtypeStruct((Np, P), bf16),
            grid=(n_m,),
            in_specs=[pl.BlockSpec((TM, F), lambda i: (i, 0)),
                      pl.BlockSpec((F, P), lambda i: (0, 0)),
                      pl.BlockSpec((P, P), lambda i: (0, 0))],
            out_specs=pl.BlockSpec((TM, P), lambda i: (i, 0)),
            compiler_params=cparams_1d,
        )(feats_b, w0_cat, w1_blk)

        # ---- call 2: hop-1, K-tiled contraction with f32 VMEM accumulators ----
        w2a, w2b = pl.pallas_call(
            functools.partial(_hop1_kernel, hidden=H),
            out_shape=(jax.ShapeDtypeStruct((Np, P), bf16),
                       jax.ShapeDtypeStruct((Np, P), bf16)),
            grid=(n_m, n_k),
            in_specs=[pl.BlockSpec((TM, TK), lambda i, k: (i, k)),   # A_p tile
                      pl.BlockSpec((TM, TK), lambda i, k: (i, k)),   # A_n tile
                      pl.BlockSpec((TK, P), lambda i, k: (k, 0))],   # X2 K-slab
            out_specs=(pl.BlockSpec((TM, P), lambda i, k: (i, 0)),
                       pl.BlockSpec((TM, P), lambda i, k: (i, 0))),
            scratch_shapes=[pltpu.VMEM((TM, P), f32),
                            pltpu.VMEM((TM, P), f32)],
            compiler_params=cparams_2d,
        )(A_p_b, A_n_b, x2)

        # ---- call 3: hop-2 (K-tiled) + combine + head + softmax + normalize ----
        z_norm_p, logprob_p, prob_p = pl.pallas_call(
            _hop2_out_kernel,
            out_shape=(jax.ShapeDtypeStruct((Np, P), f32),
                       jax.ShapeDtypeStruct((Np, CP), f32),
                       jax.ShapeDtypeStruct((Np, CP), f32)),
            grid=(n_m, n_k),
            in_specs=[pl.BlockSpec((TM, TK), lambda i, k: (i, k)),   # A_p tile
                      pl.BlockSpec((TM, TK), lambda i, k: (i, k)),   # A_n tile
                      pl.BlockSpec((TK, P), lambda i, k: (k, 0)),    # W2a K-slab (hop-2 RHS)
                      pl.BlockSpec((TK, P), lambda i, k: (k, 0)),    # W2b K-slab (hop-2 RHS)
                      pl.BlockSpec((TM, P), lambda i, k: (i, 0)),    # W2a row tile (hop-1 term)
                      pl.BlockSpec((TM, P), lambda i, k: (i, 0)),    # X2 row tile  (hop-0 term)
                      pl.BlockSpec((4, P), lambda i, k: (0, 0)),     # lane hop coefficients
                      pl.BlockSpec((P, CP), lambda i, k: (0, 0)),    # W_prob (bf16, lane-padded)
                      pl.BlockSpec((1, CP), lambda i, k: (0, 0))],   # bias (-1e30 pad mask)
            out_specs=(pl.BlockSpec((TM, P), lambda i, k: (i, 0)),
                       pl.BlockSpec((TM, CP), lambda i, k: (i, 0)),
                       pl.BlockSpec((TM, CP), lambda i, k: (i, 0))),
            scratch_shapes=[pltpu.VMEM((TM, P), f32),
                            pltpu.VMEM((TM, P), f32)],
            compiler_params=cparams_2d,
        )(A_p_b, A_n_b, w2a, w2b, w2a, x2, coefs, wprob_pad, bias_pad)

    z_norm = z_norm_p[:N, :2 * H]
    logprob = logprob_p[:N, :C]
    prob = prob_p[:N, :C]
    pred = jnp.argmax(prob, axis=1)   # argmax(prob) == argmax(logits); done in wrapper
    return z_norm, logprob, pred, prob


# ---------------- parameter init (deterministic, mirrors __init__) ----------------
def _xavier_uniform(key, shape, gain=1.414):
    fan_in, fan_out = shape
    bound = gain * math.sqrt(6.0 / (fan_in + fan_out))
    return jax.random.uniform(key, shape, jnp.float32, -bound, bound)


def init_params(key, nfeat, hidden, nclass):
    ks = jax.random.split(key, 5)
    return {
        "w_p0": _xavier_uniform(ks[0], (nfeat, hidden)),
        "w_p1": _xavier_uniform(ks[1], (hidden, hidden)),
        "w_n0": _xavier_uniform(ks[2], (nfeat, hidden)),
        "w_n1": _xavier_uniform(ks[3], (hidden, hidden)),
        "w_p": jnp.ones((4,), jnp.float32),
        "w_n": jnp.ones((3,), jnp.float32),
        "W_prob": _xavier_uniform(ks[4], (2 * hidden, nclass)),
        "bias": jnp.zeros((1, nclass), jnp.float32),
    }


# ---------------- pure-JAX f32 reference (for a sanity check) ----------------
def reference_forward(A_p, A_n, X, p):
    x_p = jnp.maximum(X @ p["w_p0"], 0.0) @ p["w_p1"]
    x_n = jnp.maximum(X @ p["w_n0"], 0.0) @ p["w_n1"]
    feat_p = (p["w_p"][0] * x_p + p["w_p"][1] * (A_p @ x_p)
              + p["w_p"][2] * (A_p @ (A_p @ x_p))
              + p["w_p"][3] * (A_n @ (A_n @ x_p)))
    feat_n = (p["w_n"][0] * (A_n @ x_n)
              + p["w_n"][1] * (A_p @ (A_n @ x_n))
              + p["w_n"][2] * (A_n @ (A_p @ x_n)))
    z = jnp.concatenate([feat_p, feat_n], axis=1)
    logits = z @ p["W_prob"] + p["bias"]
    prob = jax.nn.softmax(logits, axis=1)
    logprob = jax.nn.log_softmax(logits, axis=1)
    pred = jnp.argmax(logits, axis=1)
    z_norm = z / jnp.maximum(jnp.linalg.norm(z, axis=1, keepdims=True), 1e-12)
    return z_norm, logprob, pred, prob


if __name__ == "__main__":
    NFEAT, HIDDEN, NCLASS = 16, 32, 4

    def make_inputs(key, n, nfeat):
        k_ap, k_an, k_x = jax.random.split(key, 3)
        A_p = jax.random.uniform(k_ap, (n, n), jnp.float32)
        A_p = A_p / jnp.sum(A_p, axis=1, keepdims=True)     # row-normalized
        A_n = jax.random.uniform(k_an, (n, n), jnp.float32)
        A_n = A_n / jnp.sum(A_n, axis=1, keepdims=True)
        X = jax.random.normal(k_x, (n, nfeat), jnp.float32)
        return A_p, A_n, X

    key = jax.random.PRNGKey(0)
    k_small, k_big, k_param = jax.random.split(key, 3)
    params = init_params(k_param, NFEAT, HIDDEN, NCLASS)

    fwd = jax.jit(balance_theory_forward)

    # ---- small graph (N=64): fused single-call fast path ----
    A_p, A_n, X = make_inputs(k_small, 64, NFEAT)
    z_norm, logprob, pred, prob = jax.block_until_ready(fwd(A_p, A_n, X, params))
    z_ref, lp_ref, pred_ref, prob_ref = reference_forward(A_p, A_n, X, params)
    tol = dict(atol=5e-2, rtol=5e-2)
    assert jnp.allclose(z_norm, z_ref, **tol)
    assert jnp.allclose(logprob, lp_ref, **tol)
    assert jnp.allclose(prob, prob_ref, **tol)
    lp_sorted = jnp.sort(lp_ref, axis=1)
    gap = lp_sorted[:, -1] - lp_sorted[:, -2]
    assert bool(jnp.all((pred == pred_ref) | (gap < 0.2)))

    # ---- larger graph (N=600): K-tiled three-call path; adjacency prepared once ----
    A_p2, A_n2, X2 = make_inputs(k_big, 600, NFEAT)
    adj2 = prepare_adjacency(A_p2, A_n2)          # cache across repeated forwards
    z2, lp2, pr2, p2 = jax.block_until_ready(fwd(A_p2, A_n2, X2, params, adj2))
    z2_ref, lp2_ref, pr2_ref, p2_ref = reference_forward(A_p2, A_n2, X2, params)
    tol2 = dict(atol=1e-1, rtol=1e-1)
    assert jnp.allclose(z2, z2_ref, **tol2)
    assert jnp.allclose(lp2, lp2_ref, **tol2)
    assert jnp.allclose(p2, p2_ref, **tol2)
    lp_sorted2 = jnp.sort(lp2_ref, axis=1)
    gap2 = lp_sorted2[:, -1] - lp_sorted2[:, -2]
    assert bool(jnp.all((pr2 == pr2_ref) | (gap2 < 0.2)))

    print("KERNEL_OK")
</pallas_src>

<mosaic_0001>
module attributes {stable_mosaic.version = 11 : i64} {
  func.func @_fused_kernel(%arg0: i32, %arg1: memref<64x64xbf16, #tpu.memory_space<vmem>>, %arg2: memref<64x64xbf16, #tpu.memory_space<vmem>>, %arg3: memref<64x16xbf16, #tpu.memory_space<vmem>>, %arg4: memref<16x128xbf16, #tpu.memory_space<vmem>>, %arg5: memref<128x128xbf16, #tpu.memory_space<vmem>>, %arg6: memref<4x128xf32, #tpu.memory_space<vmem>>, %arg7: memref<128x128xbf16, #tpu.memory_space<vmem>>, %arg8: memref<1x128xf32, #tpu.memory_space<vmem>>, %arg9: memref<64x128xf32, #tpu.memory_space<vmem>>, %arg10: memref<64x128xf32, #tpu.memory_space<vmem>>, %arg11: memref<64x128xf32, #tpu.memory_space<vmem>>) attributes {dimension_semantics = [#tpu.dimension_semantics<arbitrary>], iteration_bounds = array<i64: 1>, scalar_prefetch = 0 : i64, scratch_operands = 0 : i64, tpu.core_type = #tpu.core_type<tc>, window_params = [{pipeline_mode = #tpu.pipeline_mode<synchronous>, transform_indices = @transform_0, window_bounds = array<i64: 64, 64>}, {pipeline_mode = #tpu.pipeline_mode<synchronous>, transform_indices = @transform_1, window_bounds = array<i64: 64, 64>}, {pipeline_mode = #tpu.pipeline_mode<synchronous>, transform_indices = @transform_2, window_bounds = array<i64: 64, 16>}, {pipeline_mode = #tpu.pipeline_mode<synchronous>, transform_indices = @transform_3, window_bounds = array<i64: 16, 128>}, {pipeline_mode = #tpu.pipeline_mode<synchronous>, transform_indices = @transform_4, window_bounds = array<i64: 128, 128>}, {pipeline_mode = #tpu.pipeline_mode<synchronous>, transform_indices = @transform_5, window_bounds = array<i64: 4, 128>}, {pipeline_mode = #tpu.pipeline_mode<synchronous>, transform_indices = @transform_6, window_bounds = array<i64: 128, 128>}, {pipeline_mode = #tpu.pipeline_mode<synchronous>, transform_indices = @transform_7, window_bounds = array<i64: 1, 128>}, {pipeline_mode = #tpu.pipeline_mode<synchronous>, transform_indices = @transform_8, window_bounds = array<i64: 64, 128>}, {pipeline_mode = #tpu.pipeline_mode<synchronous>, transform_indices = @transform_9, window_bounds = array<i64: 64, 128>}, {pipeline_mode = #tpu.pipeline_mode<synchronous>, transform_indices = @transform_10, window_bounds = array<i64: 64, 128>}]} {
    %c0 = arith.constant 0 : index
    %c0_0 = arith.constant 0 : index
    %0 = vector.load %arg3[%c0, %c0_0] : memref<64x16xbf16, #tpu.memory_space<vmem>>, vector<64x16xbf16>
    %c0_1 = arith.constant 0 : index
    %c0_2 = arith.constant 0 : index
    %1 = vector.load %arg4[%c0_1, %c0_2] : memref<16x128xbf16, #tpu.memory_space<vmem>>, vector<16x128xbf16>
    %cst = arith.constant dense<0.000000e+00> : vector<64x128xf32>
    %2 = tpu.matmul %0, %1, %cst {dimension_numbers = #tpu.dot_dimension_numbers<[1], [0], [0], [1], [0, 0, 1, 1], [], []>} : vector<64x16xbf16>, vector<16x128xbf16>, vector<64x128xf32> -> vector<64x128xf32>
    %cst_3 = arith.constant 0.000000e+00 : f32
    %3 = vector.broadcast %cst_3 : f32 to vector<64x128xf32>
    %4 = arith.maximumf %2, %3 : vector<64x128xf32>
    %5 = arith.truncf %4 : vector<64x128xf32> to vector<64x128xbf16>
    %c0_4 = arith.constant 0 : index
    %c0_5 = arith.constant 0 : index
    %6 = vector.load %arg5[%c0_4, %c0_5] : memref<128x128xbf16, #tpu.memory_space<vmem>>, vector<128x128xbf16>
    %cst_6 = arith.constant dense<0.000000e+00> : vector<64x128xf32>
    %7 = tpu.matmul %5, %6, %cst_6 {dimension_numbers = #tpu.dot_dimension_numbers<[1], [0], [0], [1], [0, 0, 1, 1], [], []>} : vector<64x128xbf16>, vector<128x128xbf16>, vector<64x128xf32> -> vector<64x128xf32>
    %c0_7 = arith.constant 0 : index
    %c0_8 = arith.constant 0 : index
    %8 = vector.load %arg1[%c0_7, %c0_8] : memref<64x64xbf16, #tpu.memory_space<vmem>>, vector<64x64xbf16>
    %c0_9 = arith.constant 0 : index
    %c0_10 = arith.constant 0 : index
    %9 = vector.load %arg2[%c0_9, %c0_10] : memref<64x64xbf16, #tpu.memory_space<vmem>>, vector<64x64xbf16>
    %10 = arith.truncf %7 : vector<64x128xf32> to vector<64x128xbf16>
    %cst_11 = arith.constant dense<0.000000e+00> : vector<64x128xf32>
    %11 = tpu.matmul %8, %10, %cst_11 {dimension_numbers = #tpu.dot_dimension_numbers<[1], [0], [0], [1], [0, 0, 1, 1], [], []>} : vector<64x64xbf16>, vector<64x128xbf16>, vector<64x128xf32> -> vector<64x128xf32>
    %cst_12 = arith.constant dense<0.000000e+00> : vector<64x128xf32>
    %12 = tpu.matmul %9, %10, %cst_12 {dimension_numbers = #tpu.dot_dimension_numbers<[1], [0], [0], [1], [0, 0, 1, 1], [], []>} : vector<64x64xbf16>, vector<64x128xbf16>, vector<64x128xf32> -> vector<64x128xf32>
    %13 = tpu.iota {dimensions = array<i32: 1>} : vector<1x128xi32>
    %c32_i32 = arith.constant 32 : i32
    %14 = vector.broadcast %c32_i32 : i32 to vector<1x128xi32>
    %15 = arith.cmpi slt, %13, %14 : vector<1x128xi32>
    %16 = vector.shape_cast %15 : vector<1x128xi1> to vector<1x128xi1>
    %17 = vector.broadcast %16 : vector<1x128xi1> to vector<64x128xi1>
    %18 = arith.select %17, %11, %12 : vector<64x128xi1>, vector<64x128xf32>
    %19 = vector.shape_cast %15 : vector<1x128xi1> to vector<1x128xi1>
    %20 = vector.broadcast %19 : vector<1x128xi1> to vector<64x128xi1>
    %21 = arith.select %20, %12, %11 : vector<64x128xi1>, vector<64x128xf32>
    %22 = arith.truncf %18 : vector<64x128xf32> to vector<64x128xbf16>
    %cst_13 = arith.constant dense<0.000000e+00> : vector<64x128xf32>
    %23 = tpu.matmul %8, %22, %cst_13 {dimension_numbers = #tpu.dot_dimension_numbers<[1], [0], [0], [1], [0, 0, 1, 1], [], []>} : vector<64x64xbf16>, vector<64x128xbf16>, vector<64x128xf32> -> vector<64x128xf32>
    %24 = arith.truncf %21 : vector<64x128xf32> to vector<64x128xbf16>
    %cst_14 = arith.constant dense<0.000000e+00> : vector<64x128xf32>
    %25 = tpu.matmul %9, %24, %cst_14 {dimension_numbers = #tpu.dot_dimension_numbers<[1], [0], [0], [1], [0, 0, 1, 1], [], []>} : vector<64x64xbf16>, vector<64x128xbf16>, vector<64x128xf32> -> vector<64x128xf32>
    %c0_15 = arith.constant 0 : index
    %c0_16 = arith.constant 0 : index
    %26 = vector.load %arg6[%c0_15, %c0_16] : memref<4x128xf32, #tpu.memory_space<vmem>>, vector<1x128xf32>
    %27 = vector.broadcast %26 : vector<1x128xf32> to vector<64x128xf32>
    %28 = arith.mulf %27, %7 : vector<64x128xf32>
    %c1 = arith.constant 1 : index
    %c0_17 = arith.constant 0 : index
    %29 = vector.load %arg6[%c1, %c0_17] : memref<4x128xf32, #tpu.memory_space<vmem>>, vector<1x128xf32>
    %30 = vector.broadcast %29 : vector<1x128xf32> to vector<64x128xf32>
    %31 = arith.mulf %30, %18 : vector<64x128xf32>
    %32 = arith.addf %28, %31 : vector<64x128xf32>
    %c2 = arith.constant 2 : index
    %c0_18 = arith.constant 0 : index
    %33 = vector.load %arg6[%c2, %c0_18] : memref<4x128xf32, #tpu.memory_space<vmem>>, vector<1x128xf32>
    %34 = vector.broadcast %33 : vector<1x128xf32> to vector<64x128xf32>
    %35 = arith.mulf %34, %23 : vector<64x128xf32>
    %36 = arith.addf %32, %35 : vector<64x128xf32>
    %c3 = arith.constant 3 : index
    %c0_19 = arith.constant 0 : index
    %37 = vector.load %arg6[%c3, %c0_19] : memref<4x128xf32, #tpu.memory_space<vmem>>, vector<1x128xf32>
    %38 = vector.broadcast %37 : vector<1x128xf32> to vector<64x128xf32>
    %39 = arith.mulf %38, %25 : vector<64x128xf32>
    %40 = arith.addf %36, %39 : vector<64x128xf32>
    %41 = arith.truncf %40 : vector<64x128xf32> to vector<64x128xbf16>
    %c0_20 = arith.constant 0 : index
    %c0_21 = arith.constant 0 : index
    %42 = vector.load %arg7[%c0_20, %c0_21] : memref<128x128xbf16, #tpu.memory_space<vmem>>, vector<128x128xbf16>
    %cst_22 = arith.constant dense<0.000000e+00> : vector<64x128xf32>
    %43 = tpu.matmul %41, %42, %cst_22 {dimension_numbers = #tpu.dot_dimension_numbers<[1], [0], [0], [1], [0, 0, 1, 1], [], []>} : vector<64x128xbf16>, vector<128x128xbf16>, vector<64x128xf32> -> vector<64x128xf32>
    %c0_23 = arith.constant 0 : index
    %c0_24 = arith.constant 0 : index
    %44 = vector.load %arg8[%c0_23, %c0_24] : memref<1x128xf32, #tpu.memory_space<vmem>>, vector<1x128xf32>
    %45 = vector.broadcast %44 : vector<1x128xf32> to vector<64x128xf32>
    %46 = arith.addf %43, %45 : vector<64x128xf32>
    %cst_25 = arith.constant dense<0xFF800000> : vector<64xf32>
    %47 = vector.multi_reduction <maximumf>, %46, %cst_25 [1] : vector<64x128xf32> to vector<64xf32>
    %48 = vector.shape_cast %47 : vector<64xf32> to vector<64x1xf32>
    %49 = vector.broadcast %48 : vector<64x1xf32> to vector<64x128xf32>
    %50 = arith.subf %46, %49 : vector<64x128xf32>
    %51 = math.exp %50 : vector<64x128xf32>
    %cst_26 = arith.constant dense<0.000000e+00> : vector<64xf32>
    %52 = vector.multi_reduction <add>, %51, %cst_26 [1] : vector<64x128xf32> to vector<64xf32>
    %53 = vector.shape_cast %52 : vector<64xf32> to vector<64x1xf32>
    %54 = vector.broadcast %53 : vector<64x1xf32> to vector<64x128xf32>
    %55 = arith.divf %51, %54 : vector<64x128xf32>
    %c0_27 = arith.constant 0 : index
    %c0_28 = arith.constant 0 : index
    %56 = vector.load %arg11[%c0_27, %c0_28] : memref<64x128xf32, #tpu.memory_space<vmem>>, vector<64x128xf32>
    tpu.vector_store %arg11[%c0_27, %c0_28], %55 {strides = array<i32>} : memref<64x128xf32, #tpu.memory_space<vmem>>, vector<64x128xf32>,
    %57 = math.log %53 : vector<64x1xf32>
    %58 = vector.broadcast %57 : vector<64x1xf32> to vector<64x128xf32>
    %59 = arith.subf %50, %58 : vector<64x128xf32>
    %c0_29 = arith.constant 0 : index
    %c0_30 = arith.constant 0 : index
    %60 = vector.load %arg10[%c0_29, %c0_30] : memref<64x128xf32, #tpu.memory_space<vmem>>, vector<64x128xf32>
    tpu.vector_store %arg10[%c0_29, %c0_30], %59 {strides = array<i32>} : memref<64x128xf32, #tpu.memory_space<vmem>>, vector<64x128xf32>,
    %61 = arith.mulf %40, %40 : vector<64x128xf32>
    %cst_31 = arith.constant dense<0.000000e+00> : vector<64xf32>
    %62 = vector.multi_reduction <add>, %61, %cst_31 [1] : vector<64x128xf32> to vector<64xf32>
    %63 = vector.shape_cast %62 : vector<64xf32> to vector<64x1xf32>
    %cst_32 = arith.constant 1.000000e-24 : f32
    %64 = vector.broadcast %cst_32 : f32 to vector<64x1xf32>
    %65 = arith.maximumf %63, %64 : vector<64x1xf32>
    %66 = math.rsqrt %65 : vector<64x1xf32>
    %67 = vector.broadcast %66 : vector<64x1xf32> to vector<64x128xf32>
    %68 = arith.mulf %40, %67 : vector<64x128xf32>
    %c0_33 = arith.constant 0 : index
    %c0_34 = arith.constant 0 : index
    %69 = vector.load %arg9[%c0_33, %c0_34] : memref<64x128xf32, #tpu.memory_space<vmem>>, vector<64x128xf32>
    tpu.vector_store %arg9[%c0_33, %c0_34], %68 {strides = array<i32>} : memref<64x128xf32, #tpu.memory_space<vmem>>, vector<64x128xf32>,
    return
  }
  func.func @transform_0(%arg0: i32) -> (i32, i32) {
    %c0_i32 = arith.constant 0 : i32
    %c0_i32_0 = arith.constant 0 : i32
    %c0_i32_1 = arith.constant 0 : i32
    return %c0_i32, %c0_i32_0 : i32, i32
  }
  func.func @transform_1(%arg0: i32) -> (i32, i32) {
    %c0_i32 = arith.constant 0 : i32
    %c0_i32_0 = arith.constant 0 : i32
    %c0_i32_1 = arith.constant 0 : i32
    return %c0_i32, %c0_i32_0 : i32, i32
  }
  func.func @transform_2(%arg0: i32) -> (i32, i32) {
    %c0_i32 = arith.constant 0 : i32
    %c0_i32_0 = arith.constant 0 : i32
    %c0_i32_1 = arith.constant 0 : i32
    return %c0_i32, %c0_i32_0 : i32, i32
  }
  func.func @transform_3(%arg0: i32) -> (i32, i32) {
    %c0_i32 = arith.constant 0 : i32
    %c0_i32_0 = arith.constant 0 : i32
    %c0_i32_1 = arith.constant 0 : i32
    return %c0_i32, %c0_i32_0 : i32, i32
  }
  func.func @transform_4(%arg0: i32) -> (i32, i32) {
    %c0_i32 = arith.constant 0 : i32
    %c0_i32_0 = arith.constant 0 : i32
    %c0_i32_1 = arith.constant 0 : i32
    return %c0_i32, %c0_i32_0 : i32, i32
  }
  func.func @transform_5(%arg0: i32) -> (i32, i32) {
    %c0_i32 = arith.constant 0 : i32
    %c0_i32_0 = arith.constant 0 : i32
    %c0_i32_1 = arith.constant 0 : i32
    return %c0_i32, %c0_i32_0 : i32, i32
  }
  func.func @transform_6(%arg0: i32) -> (i32, i32) {
    %c0_i32 = arith.constant 0 : i32
    %c0_i32_0 = arith.constant 0 : i32
    %c0_i32_1 = arith.constant 0 : i32
    return %c0_i32, %c0_i32_0 : i32, i32
  }
  func.func @transform_7(%arg0: i32) -> (i32, i32) {
    %c0_i32 = arith.constant 0 : i32
    %c0_i32_0 = arith.constant 0 : i32
    %c0_i32_1 = arith.constant 0 : i32
    return %c0_i32, %c0_i32_0 : i32, i32
  }
  func.func @transform_8(%arg0: i32) -> (i32, i32) {
    %c0_i32 = arith.constant 0 : i32
    %c0_i32_0 = arith.constant 0 : i32
    %c0_i32_1 = arith.constant 0 : i32
    return %c0_i32, %c0_i32_0 : i32, i32
  }
  func.func @transform_9(%arg0: i32) -> (i32, i32) {
    %c0_i32 = arith.constant 0 : i32
    %c0_i32_0 = arith.constant 0 : i32
    %c0_i32_1 = arith.constant 0 : i32
    return %c0_i32, %c0_i32_0 : i32, i32
  }
  func.func @transform_10(%arg0: i32) -> (i32, i32) {
    %c0_i32 = arith.constant 0 : i32
    %c0_i32_0 = arith.constant 0 : i32
    %c0_i32_1 = arith.constant 0 : i32
    return %c0_i32, %c0_i32_0 : i32, i32
  }
}

</mosaic_0001>

<llo_original>
// kernel: balance_theory_forward.1
$region0: #{balance_theory_forward.1}
  #allocation0 [shape = 'u32[]', space=smem, size = 0x4, offset = 0x4, fixed_abs, tag = 'smem constant byte address 0x4 - core index']
  #allocation1 [shape = 'u32[72,128]{1,0:T(1,128)}', space=vmem, size = 0x9000, scoped, tag = 'internal scratch']
  %s0 = inlined_call_operand.vmem [shape: bf16[64,64], index: 0, kind: input, shape index: {}]
  %s1 = inlined_call_operand.vmem [shape: bf16[64,64], index: 1, kind: input, shape index: {}]
  %s2 = inlined_call_operand.vmem [shape: bf16[64,16], index: 2, kind: input, shape index: {}]
  %s3 = inlined_call_operand.vmem [shape: bf16[16,128], index: 3, kind: input, shape index: {}]
  %s4 = inlined_call_operand.vmem [shape: bf16[128,128], index: 4, kind: input, shape index: {}]
  %s5 = inlined_call_operand.vmem [shape: f32[4,128], index: 5, kind: input, shape index: {}]
  %s6 = inlined_call_operand.vmem [shape: bf16[128,128], index: 6, kind: input, shape index: {}]
  %s7 = inlined_call_operand.vmem [shape: f32[1,128], index: 7, kind: input, shape index: {}]
  %s8 = inlined_call_operand.hbm [shape: f32[64,128], index: 8, kind: output, shape index: {0}]
  %s9 = inlined_call_operand.vmem [shape: f32[64,128], index: 9, kind: output, shape index: {1}]
  %s10 = inlined_call_operand.vmem [shape: f32[64,128], index: 10, kind: output, shape index: {2}]
  %11 = xla_tuple %s8, %s9, %s10
  %s12 = sld [smem:[#allocation0]]
  $region58: #{balance_theory_forward.1} parent=0
    _
  %s14 = ssub.s32 1, %s12
  %s15 = scalar_select 0, %s14, %s12
  $region1: #{balance_theory_forward.1} parent=0
    #allocation2 [shape = 'u8[32768]{0}', space=vmem, size = 0x8000, scoped, tag = 'output window, operand 0, single buffered']
    #allocation3 [shape = 's32[1]{0}', space=sflag, size = 0x4, scoped, tag = 'scoped memory for balance_theory_forward.1']
    %16 = vsyncpa [#allocation3], 0
    // Predicated region
    $region2: #{balance_theory_forward.1} parent=1 // pred_check
      _
    $region3: #{balance_theory_forward.1} parent=1 // pred_check_branch
      %18 = sbr.rel (0) target = $region5
    $region4: #{balance_theory_forward.1} parent=1 // pred_region
      _
    $region5: #{balance_theory_forward.1} parent=1 // pred_fallthru
      _
    // Predicated region
    $region6: #{balance_theory_forward.1} parent=1 // pred_check
      _
    $region7: #{balance_theory_forward.1} parent=1 // pred_check_branch
      %20 = sbr.rel (0) target = $region9
    $region8: #{balance_theory_forward.1} parent=1 // pred_region
      _
    $region9: #{balance_theory_forward.1} parent=1 // pred_fallthru
      _
    // Predicated region
    $region10: #{balance_theory_forward.1} parent=1 // pred_check
      _
    $region11: #{balance_theory_forward.1} parent=1 // pred_check_branch
      %22 = sbr.rel (0) target = $region13
    $region12: #{balance_theory_forward.1} parent=1 // pred_region
      _
    $region13: #{balance_theory_forward.1} parent=1 // pred_fallthru
      _
    // Predicated region
    $region14: #{balance_theory_forward.1} parent=1 // pred_check
      _
    $region15: #{balance_theory_forward.1} parent=1 // pred_check_branch
      %24 = sbr.rel (0) target = $region17
    $region16: #{balance_theory_forward.1} parent=1 // pred_region
      _
    $region17: #{balance_theory_forward.1} parent=1 // pred_fallthru
      _
    // Predicated region
    $region18: #{balance_theory_forward.1} parent=1 // pred_check
      _
    $region19: #{balance_theory_forward.1} parent=1 // pred_check_branch
      %26 = sbr.rel (0) target = $region21
    $region20: #{balance_theory_forward.1} parent=1 // pred_region
      _
    $region21: #{balance_theory_forward.1} parent=1 // pred_fallthru
      _
    // Predicated region
    $region22: #{balance_theory_forward.1} parent=1 // pred_check
      _
    $region23: #{balance_theory_forward.1} parent=1 // pred_check_branch
      %28 = sbr.rel (0) target = $region25
    $region24: #{balance_theory_forward.1} parent=1 // pred_region
      _
    $region25: #{balance_theory_forward.1} parent=1 // pred_fallthru
      _
    // Predicated region
    $region26: #{balance_theory_forward.1} parent=1 // pred_check
      _
    $region27: #{balance_theory_forward.1} parent=1 // pred_check_branch
      %30 = sbr.rel (0) target = $region29
    $region28: #{balance_theory_forward.1} parent=1 // pred_region
      _
    $region29: #{balance_theory_forward.1} parent=1 // pred_fallthru
      _
    // Predicated region
    $region30: #{balance_theory_forward.1} parent=1 // pred_check
      _
    $region31: #{balance_theory_forward.1} parent=1 // pred_check_branch
      %32 = sbr.rel (0) target = $region33
    $region32: #{balance_theory_forward.1} parent=1 // pred_region
      _
    $region33: #{balance_theory_forward.1} parent=1 // pred_fallthru
      _
    %v34 = vld [vmem:[%s2] sm:$0xf]
    %v35 = vld [vmem:[%s2 + $0x4] sm:$0xf]
    %v36 = vld [vmem:[%s2 + $0x8] sm:$0xf]
    %v37 = vld [vmem:[%s2 + $0xc] sm:$0xf]
    %v38 = vld [vmem:[%s2 + $0x10] sm:$0xf]
    %v39 = vld [vmem:[%s2 + $0x14] sm:$0xf]
    %v40 = vld [vmem:[%s2 + $0x18] sm:$0xf]
    %v41 = vld [vmem:[%s2 + $0x1c] sm:$0xf]
    %v42 = vld [vmem:[%s3] sm:$0xf]
    %v43 = vld [vmem:[%s3 + $0x4] sm:$0xf]
    %v52 = vunpack.c.l.b16 %v34
    %v53 = vunpack.c.l.b16 %v35
    %v54 = vunpack.c.l.b16 %v36
    %v55 = vunpack.c.l.b16 %v37
    %v56 = vunpack.c.l.b16 %v38
    %v57 = vunpack.c.l.b16 %v39
    %v58 = vunpack.c.l.b16 %v40
    %v59 = vunpack.c.l.b16 %v41
    %v60 = vpack.c.b16 %v53, %v52
    %v61 = vpack.c.b16 %v55, %v54
    %v62 = vpack.c.b16 %v57, %v56
    %v63 = vpack.c.b16 %v59, %v58
    %v66 = vunpack.c.l.b16 %v42
    %v67 = vunpack.c.l.b16 %v43
    %v68 = vpack.c.b16 %v67, %v66
    %vm70 = vcmask 130048
    %v72 = vsel %vm70, %v60, 0
    %v75 = vsel %vm70, %v61, 0
    %v78 = vsel %vm70, %v62, 0
    %v81 = vsel %vm70, %v63, 0
    %83 = vmatpush.bf16.msra.mxu0 0
    %84 = vmatpush.bf16.msra.mxu0 0
    %85 = vmatpush.bf16.msra.mxu0 0
    %86 = vmatpush.bf16.msra.mxu0 0
    %87 = vmatpush.bf16.msra.mxu0 0
    %88 = vmatpush.bf16.msra.mxu0 0
    %89 = vmatpush.bf16.msra.mxu0 0
    %90 = vmatpush.bf16.msra.mxu0 %v68
    %91 = vmatmul.bf16.gmra.mxu0 %v72
    %v92 = vpop.f32.mrf.mxu0
    %v93 = vadd.f32 0.0, %v92
    %v94 = vpop.f32.mrf.mxu0
    %v95 = vadd.f32 0.0, %v94
    %96 = vmatmul.bf16.gmra.mxu0 %v75
    %v97 = vpop.f32.mrf.mxu0
    %v98 = vadd.f32 0.0, %v97
    %v99 = vpop.f32.mrf.mxu0
    %v100 = vadd.f32 0.0, %v99
    %101 = vmatmul.bf16.gmra.mxu0 %v78
    %v102 = vpop.f32.mrf.mxu0
    %v103 = vadd.f32 0.0, %v102
    %v104 = vpop.f32.mrf.mxu0
    %v105 = vadd.f32 0.0, %v104
    %106 = vmatmul.bf16.gmra.mxu0 %v81
    %v107 = vpop.f32.mrf.mxu0
    %v108 = vadd.f32 0.0, %v107
    %v109 = vpop.f32.mrf.mxu0
    %v110 = vadd.f32 0.0, %v109
    %111 = vdwg.mxu0
    %v112 = vmax.f32 %v93, 0.0
    %v113 = vmax.f32 %v95, 0.0
    %v114 = vmax.f32 %v98, 0.0
    %v115 = vmax.f32 %v100, 0.0
    %v116 = vmax.f32 %v103, 0.0
    %v117 = vmax.f32 %v105, 0.0
    %v118 = vmax.f32 %v108, 0.0
    %v119 = vmax.f32 %v110, 0.0
    %v120 = vpack.c.bf16 %v113, %v112
    %v121 = vpack.c.bf16 %v115, %v114
    %v122 = vpack.c.bf16 %v117, %v116
    %v123 = vpack.c.bf16 %v119, %v118
    %v124 = vld [vmem:[%s4] sm:$0xf]
    %v125 = vld [vmem:[%s4 + $0x4] sm:$0xf]
    %v126 = vld [vmem:[%s4 + $0x8] sm:$0xf]
    %v127 = vld [vmem:[%s4 + $0xc] sm:$0xf]
    %v128 = vld [vmem:[%s4 + $0x10] sm:$0xf]
    %v129 = vld [vmem:[%s4 + $0x14] sm:$0xf]
    %v130 = vld [vmem:[%s4 + $0x18] sm:$0xf]
    %v131 = vld [vmem:[%s4 + $0x1c] sm:$0xf]
    %v132 = vld [vmem:[%s4 + $0x20] sm:$0xf]
    %v133 = vld [vmem:[%s4 + $0x24] sm:$0xf]
    %v134 = vld [vmem:[%s4 + $0x28] sm:$0xf]
    %v135 = vld [vmem:[%s4 + $0x2c] sm:$0xf]
    %v136 = vld [vmem:[%s4 + $0x30] sm:$0xf]
    %v137 = vld [vmem:[%s4 + $0x34] sm:$0xf]
    %v138 = vld [vmem:[%s4 + $0x38] sm:$0xf]
    %v139 = vld [vmem:[%s4 + $0x3c] sm:$0xf]
    %v156 = vunpack.c.l.b16 %v124
    %v157 = vunpack.c.l.b16 %v125
    %v158 = vunpack.c.l.b16 %v126
    %v159 = vunpack.c.l.b16 %v127
    %v160 = vunpack.c.l.b16 %v128
    %v161 = vunpack.c.l.b16 %v129
    %v162 = vunpack.c.l.b16 %v130
    %v163 = vunpack.c.l.b16 %v131
    %v164 = vunpack.c.l.b16 %v132
    %v165 = vunpack.c.l.b16 %v133
    %v166 = vunpack.c.l.b16 %v134
    %v167 = vunpack.c.l.b16 %v135
    %v168 = vunpack.c.l.b16 %v136
    %v169 = vunpack.c.l.b16 %v137
    %v170 = vunpack.c.l.b16 %v138
    %v171 = vunpack.c.l.b16 %v139
    %v172 = vpack.c.b16 %v157, %v156
    %v173 = vpack.c.b16 %v159, %v158
    %v174 = vpack.c.b16 %v161, %v160
    %v175 = vpack.c.b16 %v163, %v162
    %v176 = vpack.c.b16 %v165, %v164
    %v177 = vpack.c.b16 %v167, %v166
    %v178 = vpack.c.b16 %v169, %v168
    %v179 = vpack.c.b16 %v171, %v170
    %188 = vmatpush.bf16.msra.mxu0 %v179
    %189 = vmatpush.bf16.msra.mxu0 %v178
    %190 = vmatpush.bf16.msra.mxu0 %v177
    %191 = vmatpush.bf16.msra.mxu0 %v176
    %192 = vmatpush.bf16.msra.mxu0 %v175
    %193 = vmatpush.bf16.msra.mxu0 %v174
    %194 = vmatpush.bf16.msra.mxu0 %v173
    %195 = vmatpush.bf16.msra.mxu0 %v172
    %196 = vmatmul.bf16.gmra.mxu0 %v120
    %v197 = vpop.f32.mrf.mxu0
    %v198 = vadd.f32 0.0, %v197
    %v199 = vpop.f32.mrf.mxu0
    %v200 = vadd.f32 0.0, %v199
    %201 = vmatmul.bf16.gmra.mxu0 %v121
    %v202 = vpop.f32.mrf.mxu0
    %v203 = vadd.f32 0.0, %v202
    %v204 = vpop.f32.mrf.mxu0
    %v205 = vadd.f32 0.0, %v204
    %206 = vmatmul.bf16.gmra.mxu0 %v122
    %v207 = vpop.f32.mrf.mxu0
    %v208 = vadd.f32 0.0, %v207
    %v209 = vpop.f32.mrf.mxu0
    %v210 = vadd.f32 0.0, %v209
    %211 = vmatmul.bf16.gmra.mxu0 %v123
    %v212 = vpop.f32.mrf.mxu0
    %v213 = vadd.f32 0.0, %v212
    %v214 = vpop.f32.mrf.mxu0
    %v215 = vadd.f32 0.0, %v214
    %216 = vdwg.mxu0
    %v217 = vld [vmem:[%s0] sm:$0xf]
    %v218 = vld [vmem:[%s0 + $0x4] sm:$0xf]
    %v219 = vld [vmem:[%s0 + $0x8] sm:$0xf]
    %v220 = vld [vmem:[%s0 + $0xc] sm:$0xf]
    %v221 = vld [vmem:[%s0 + $0x10] sm:$0xf]
    %v222 = vld [vmem:[%s0 + $0x14] sm:$0xf]
    %v223 = vld [vmem:[%s0 + $0x18] sm:$0xf]
    %v224 = vld [vmem:[%s0 + $0x1c] sm:$0xf]
    %v225 = vld [vmem:[%s1] sm:$0xf]
    %v226 = vld [vmem:[%s1 + $0x4] sm:$0xf]
    %v227 = vld [vmem:[%s1 + $0x8] sm:$0xf]
    %v228 = vld [vmem:[%s1 + $0xc] sm:$0xf]
    %v229 = vld [vmem:[%s1 + $0x10] sm:$0xf]
    %v230 = vld [vmem:[%s1 + $0x14] sm:$0xf]
    %v231 = vld [vmem:[%s1 + $0x18] sm:$0xf]
    %v232 = vld [vmem:[%s1 + $0x1c] sm:$0xf]
    %v233 = vpack.c.bf16 %v200, %v198
    %v234 = vpack.c.bf16 %v205, %v203
    %v235 = vpack.c.bf16 %v210, %v208
    %v236 = vpack.c.bf16 %v215, %v213
    %v245 = vunpack.c.l.b16 %v217
    %v246 = vunpack.c.l.b16 %v218
    %v247 = vunpack.c.l.b16 %v219
    %v248 = vunpack.c.l.b16 %v220
    %v249 = vunpack.c.l.b16 %v221
    %v250 = vunpack.c.l.b16 %v222
    %v251 = vunpack.c.l.b16 %v223
    %v252 = vunpack.c.l.b16 %v224
    %v253 = vpack.c.b16 %v246, %v245
    %v254 = vpack.c.b16 %v248, %v247
    %v255 = vpack.c.b16 %v250, %v249
    %v256 = vpack.c.b16 %v252, %v251
    %vm257 = vcmask 523264
    %v259 = vsel %vm257, %v253, 0
    %v262 = vsel %vm257, %v254, 0
    %v265 = vsel %vm257, %v255, 0
    %v268 = vsel %vm257, %v256, 0
    %270 = vmatpush.bf16.msra.mxu0 0
    %271 = vmatpush.bf16.msra.mxu0 0
    %272 = vmatpush.bf16.msra.mxu0 0
    %273 = vmatpush.bf16.msra.mxu0 0
    %274 = vmatpush.bf16.msra.mxu0 %v236
    %275 = vmatpush.bf16.msra.mxu0 %v235
    %276 = vmatpush.bf16.msra.mxu0 %v234
    %277 = vmatpush.bf16.msra.mxu0 %v233
    %278 = vmatmul.bf16.gmra.mxu0 %v259
    %v279 = vpop.f32.mrf.mxu0
    %v280 = vadd.f32 0.0, %v279
    %v281 = vpop.f32.mrf.mxu0
    %v282 = vadd.f32 0.0, %v281
    %283 = vmatmul.bf16.gmra.mxu0 %v262
    %v284 = vpop.f32.mrf.mxu0
    %v285 = vadd.f32 0.0, %v284
    %v286 = vpop.f32.mrf.mxu0
    %v287 = vadd.f32 0.0, %v286
    %288 = vmatmul.bf16.gmra.mxu0 %v265
    %v289 = vpop.f32.mrf.mxu0
    %v290 = vadd.f32 0.0, %v289
    %v291 = vpop.f32.mrf.mxu0
    %v292 = vadd.f32 0.0, %v291
    %293 = vmatmul.bf16.gmra.mxu0 %v268
    %v294 = vpop.f32.mrf.mxu0
    %v295 = vadd.f32 0.0, %v294
    %v296 = vpop.f32.mrf.mxu0
    %v297 = vadd.f32 0.0, %v296
    %298 = vdwg.mxu0
    %v307 = vunpack.c.l.b16 %v225
    %v308 = vunpack.c.l.b16 %v226
    %v309 = vunpack.c.l.b16 %v227
    %v310 = vunpack.c.l.b16 %v228
    %v311 = vunpack.c.l.b16 %v229
    %v312 = vunpack.c.l.b16 %v230
    %v313 = vunpack.c.l.b16 %v231
    %v314 = vunpack.c.l.b16 %v232
    %v315 = vpack.c.b16 %v308, %v307
    %v316 = vpack.c.b16 %v310, %v309
    %v317 = vpack.c.b16 %v312, %v311
    %v318 = vpack.c.b16 %v314, %v313
    %v320 = vsel %vm257, %v315, 0
    %v323 = vsel %vm257, %v316, 0
    %v326 = vsel %vm257, %v317, 0
    %v329 = vsel %vm257, %v318, 0
    %331 = vmatpush.bf16.msra.mxu0 0
    %332 = vmatpush.bf16.msra.mxu0 0
    %333 = vmatpush.bf16.msra.mxu0 0
    %334 = vmatpush.bf16.msra.mxu0 0
    %335 = vmatpush.bf16.msra.mxu0 %v236
    %336 = vmatpush.bf16.msra.mxu0 %v235
    %337 = vmatpush.bf16.msra.mxu0 %v234
    %338 = vmatpush.bf16.msra.mxu0 %v233
    %339 = vmatmul.bf16.gmra.mxu0 %v320
    %v340 = vpop.f32.mrf.mxu0
    %v341 = vadd.f32 0.0, %v340
    %v342 = vpop.f32.mrf.mxu0
    %v343 = vadd.f32 0.0, %v342
    %344 = vmatmul.bf16.gmra.mxu0 %v323
    %v345 = vpop.f32.mrf.mxu0
    %v346 = vadd.f32 0.0, %v345
    %v347 = vpop.f32.mrf.mxu0
    %v348 = vadd.f32 0.0, %v347
    %349 = vmatmul.bf16.gmra.mxu0 %v326
    %v350 = vpop.f32.mrf.mxu0
    %v351 = vadd.f32 0.0, %v350
    %v352 = vpop.f32.mrf.mxu0
    %v353 = vadd.f32 0.0, %v352
    %354 = vmatmul.bf16.gmra.mxu0 %v329
    %v355 = vpop.f32.mrf.mxu0
    %v356 = vadd.f32 0.0, %v355
    %v357 = vpop.f32.mrf.mxu0
    %v358 = vadd.f32 0.0, %v357
    %359 = vdwg.mxu0
    %v360 = vlaneseq
    %v361 = vand.u32 %v360, 127
    %vm362 = vcmp.lt.s32.totalorder %v361, 32
    %v363 = vsel %vm362, 1, 0
    %vm364 = vcmp.eq.s32.totalorder %v363, 1
    %v365 = vsel %vm364, %v280, %v341
    %v366 = vsel %vm364, %v282, %v343
    %v367 = vsel %vm364, %v285, %v346
    %v368 = vsel %vm364, %v287, %v348
    %v369 = vsel %vm364, %v290, %v351
    %v370 = vsel %vm364, %v292, %v353
    %v371 = vsel %vm364, %v295, %v356
    %v372 = vsel %vm364, %v297, %v358
    %v373 = vsel %vm364, %v341, %v280
    %v374 = vsel %vm364, %v343, %v282
    %v375 = vsel %vm364, %v346, %v285
    %v376 = vsel %vm364, %v348, %v287
    %v377 = vsel %vm364, %v351, %v290
    %v378 = vsel %vm364, %v353, %v292
    %v379 = vsel %vm364, %v356, %v295
    %v380 = vsel %vm364, %v358, %v297
    %v381 = vpack.c.bf16 %v366, %v365
    %v382 = vpack.c.bf16 %v368, %v367
    %v383 = vpack.c.bf16 %v370, %v369
    %v384 = vpack.c.bf16 %v372, %v371
    %385 = vmatpush.bf16.msra.mxu0 0
    %386 = vmatpush.bf16.msra.mxu0 0
    %387 = vmatpush.bf16.msra.mxu0 0
    %388 = vmatpush.bf16.msra.mxu0 0
    %389 = vmatpush.bf16.msra.mxu0 %v384
    %390 = vmatpush.bf16.msra.mxu0 %v383
    %391 = vmatpush.bf16.msra.mxu0 %v382
    %392 = vmatpush.bf16.msra.mxu0 %v381
    %393 = vmatmul.bf16.gmra.mxu0 %v259
    %v394 = vpop.f32.mrf.mxu0
    %v395 = vadd.f32 0.0, %v394
    %v396 = vpop.f32.mrf.mxu0
    %v397 = vadd.f32 0.0, %v396
    %398 = vmatmul.bf16.gmra.mxu0 %v262
    %v399 = vpop.f32.mrf.mxu0
    %v400 = vadd.f32 0.0, %v399
    %v401 = vpop.f32.mrf.mxu0
    %v402 = vadd.f32 0.0, %v401
    %403 = vmatmul.bf16.gmra.mxu0 %v265
    %v404 = vpop.f32.mrf.mxu0
    %v405 = vadd.f32 0.0, %v404
    %v406 = vpop.f32.mrf.mxu0
    %v407 = vadd.f32 0.0, %v406
    %408 = vmatmul.bf16.gmra.mxu0 %v268
    %v409 = vpop.f32.mrf.mxu0
    %v410 = vadd.f32 0.0, %v409
    %v411 = vpop.f32.mrf.mxu0
    %v412 = vadd.f32 0.0, %v411
    %413 = vdwg.mxu0
    %v414 = vpack.c.bf16 %v374, %v373
    %v415 = vpack.c.bf16 %v376, %v375
    %v416 = vpack.c.bf16 %v378, %v377
    %v417 = vpack.c.bf16 %v380, %v379
    %418 = vmatpush.bf16.msra.mxu0 0
    %419 = vmatpush.bf16.msra.mxu0 0
    %420 = vmatpush.bf16.msra.mxu0 0
    %421 = vmatpush.bf16.msra.mxu0 0
    %422 = vmatpush.bf16.msra.mxu0 %v417
    %423 = vmatpush.bf16.msra.mxu0 %v416
    %424 = vmatpush.bf16.msra.mxu0 %v415
    %425 = vmatpush.bf16.msra.mxu0 %v414
    %426 = vmatmul.bf16.gmra.mxu0 %v320
    %v427 = vpop.f32.mrf.mxu0
    %v428 = vadd.f32 0.0, %v427
    %v429 = vpop.f32.mrf.mxu0
    %v430 = vadd.f32 0.0, %v429
    %431 = vmatmul.bf16.gmra.mxu0 %v323
    %v432 = vpop.f32.mrf.mxu0
    %v433 = vadd.f32 0.0, %v432
    %v434 = vpop.f32.mrf.mxu0
    %v435 = vadd.f32 0.0, %v434
    %436 = vmatmul.bf16.gmra.mxu0 %v326
    %v437 = vpop.f32.mrf.mxu0
    %v438 = vadd.f32 0.0, %v437
    %v439 = vpop.f32.mrf.mxu0
    %v440 = vadd.f32 0.0, %v439
    %441 = vmatmul.bf16.gmra.mxu0 %v329
    %v442 = vpop.f32.mrf.mxu0
    %v443 = vadd.f32 0.0, %v442
    %v444 = vpop.f32.mrf.mxu0
    %v445 = vadd.f32 0.0, %v444
    %446 = vdwg.mxu0
    %v447 = vld [vmem:[%s5] sm:$0x1]
    %v448 = vperm.slane %v447, 0
    %v449 = vmul.f32 %v448, %v198
    %v450 = vmul.f32 %v448, %v200
    %v451 = vmul.f32 %v448, %v203
    %v452 = vmul.f32 %v448, %v205
    %v453 = vmul.f32 %v448, %v208
    %v454 = vmul.f32 %v448, %v210
    %v455 = vmul.f32 %v448, %v213
    %v456 = vmul.f32 %v448, %v215
    %v457 = vld [vmem:[%s5 + $0x1] sm:$0x1]
    %v458 = vperm.slane %v457, 0
    %v459 = vmul.f32 %v458, %v365
    %v460 = vmul.f32 %v458, %v366
    %v461 = vmul.f32 %v458, %v367
    %v462 = vmul.f32 %v458, %v368
    %v463 = vmul.f32 %v458, %v369
    %v464 = vmul.f32 %v458, %v370
    %v465 = vmul.f32 %v458, %v371
    %v466 = vmul.f32 %v458, %v372
    %v467 = vadd.f32 %v449, %v459
    %v468 = vadd.f32 %v450, %v460
    %v469 = vadd.f32 %v451, %v461
    %v470 = vadd.f32 %v452, %v462
    %v471 = vadd.f32 %v453, %v463
    %v472 = vadd.f32 %v454, %v464
    %v473 = vadd.f32 %v455, %v465
    %v474 = vadd.f32 %v456, %v466
    %v475 = vld [vmem:[%s5 + $0x2] sm:$0x1]
    %v476 = vperm.slane %v475, 0
    %v477 = vmul.f32 %v476, %v395
    %v478 = vmul.f32 %v476, %v397
    %v479 = vmul.f32 %v476, %v400
    %v480 = vmul.f32 %v476, %v402
    %v481 = vmul.f32 %v476, %v405
    %v482 = vmul.f32 %v476, %v407
    %v483 = vmul.f32 %v476, %v410
    %v484 = vmul.f32 %v476, %v412
    %v485 = vadd.f32 %v467, %v477
    %v486 = vadd.f32 %v468, %v478
    %v487 = vadd.f32 %v469, %v479
    %v488 = vadd.f32 %v470, %v480
    %v489 = vadd.f32 %v471, %v481
    %v490 = vadd.f32 %v472, %v482
    %v491 = vadd.f32 %v473, %v483
    %v492 = vadd.f32 %v474, %v484
    %v493 = vld [vmem:[%s5 + $0x3] sm:$0x1]
    %v494 = vperm.slane %v493, 0
    %v495 = vmul.f32 %v494, %v428
    %v496 = vmul.f32 %v494, %v430
    %v497 = vmul.f32 %v494, %v433
    %v498 = vmul.f32 %v494, %v435
    %v499 = vmul.f32 %v494, %v438
    %v500 = vmul.f32 %v494, %v440
    %v501 = vmul.f32 %v494, %v443
    %v502 = vmul.f32 %v494, %v445
    %v503 = vadd.f32 %v485, %v495
    %v504 = vadd.f32 %v486, %v496
    %v505 = vadd.f32 %v487, %v497
    %v506 = vadd.f32 %v488, %v498
    %v507 = vadd.f32 %v489, %v499
    %v508 = vadd.f32 %v490, %v500
    %v509 = vadd.f32 %v491, %v501
    %v510 = vadd.f32 %v492, %v502
    %v511 = vpack.c.bf16 %v504, %v503
    %v512 = vpack.c.bf16 %v506, %v505
    %v513 = vpack.c.bf16 %v508, %v507
    %v514 = vpack.c.bf16 %v510, %v509
    %v515 = vld [vmem:[%s6] sm:$0xf]
    %v516 = vld [vmem:[%s6 + $0x4] sm:$0xf]
    %v517 = vld [vmem:[%s6 + $0x8] sm:$0xf]
    %v518 = vld [vmem:[%s6 + $0xc] sm:$0xf]
    %v519 = vld [vmem:[%s6 + $0x10] sm:$0xf]
    %v520 = vld [vmem:[%s6 + $0x14] sm:$0xf]
    %v521 = vld [vmem:[%s6 + $0x18] sm:$0xf]
    %v522 = vld [vmem:[%s6 + $0x1c] sm:$0xf]
    %v523 = vld [vmem:[%s6 + $0x20] sm:$0xf]
    %v524 = vld [vmem:[%s6 + $0x24] sm:$0xf]
    %v525 = vld [vmem:[%s6 + $0x28] sm:$0xf]
    %v526 = vld [vmem:[%s6 + $0x2c] sm:$0xf]
    %v527 = vld [vmem:[%s6 + $0x30] sm:$0xf]
    %v528 = vld [vmem:[%s6 + $0x34] sm:$0xf]
    %v529 = vld [vmem:[%s6 + $0x38] sm:$0xf]
    %v530 = vld [vmem:[%s6 + $0x3c] sm:$0xf]
    %v531 = vld [vmem:[%s7] sm:$0x1]
    %v533 = vperm.slane %v531, 0
    %v551 = vunpack.c.l.b16 %v515
    %v552 = vunpack.c.l.b16 %v516
    %v553 = vunpack.c.l.b16 %v517
    %v554 = vunpack.c.l.b16 %v518
    %v555 = vunpack.c.l.b16 %v519
    %v556 = vunpack.c.l.b16 %v520
    %v557 = vunpack.c.l.b16 %v521
    %v558 = vunpack.c.l.b16 %v522
    %v559 = vunpack.c.l.b16 %v523
    %v560 = vunpack.c.l.b16 %v524
    %v561 = vunpack.c.l.b16 %v525
    %v562 = vunpack.c.l.b16 %v526
    %v563 = vunpack.c.l.b16 %v527
    %v564 = vunpack.c.l.b16 %v528
    %v565 = vunpack.c.l.b16 %v529
    %v566 = vunpack.c.l.b16 %v530
    %v567 = vpack.c.b16 %v552, %v551
    %v568 = vpack.c.b16 %v554, %v553
    %v569 = vpack.c.b16 %v556, %v555
    %v570 = vpack.c.b16 %v558, %v557
    %v571 = vpack.c.b16 %v560, %v559
    %v572 = vpack.c.b16 %v562, %v561
    %v573 = vpack.c.b16 %v564, %v563
    %v574 = vpack.c.b16 %v566, %v565
    %583 = vmatpush.bf16.msra.mxu0 %v574
    %584 = vmatpush.bf16.msra.mxu0 %v573
    %585 = vmatpush.bf16.msra.mxu0 %v572
    %586 = vmatpush.bf16.msra.mxu0 %v571
    %587 = vmatpush.bf16.msra.mxu0 %v570
    %588 = vmatpush.bf16.msra.mxu0 %v569
    %589 = vmatpush.bf16.msra.mxu0 %v568
    %590 = vmatpush.bf16.msra.mxu0 %v567
    %591 = vmatmul.bf16.gmra.mxu0 %v511
    %v592 = vpop.f32.mrf.mxu0
    %v593 = vadd.f32 %v533, %v592
    %v594 = vpop.f32.mrf.mxu0
    %v595 = vadd.f32 %v533, %v594
    %596 = vmatmul.bf16.gmra.mxu0 %v512
    %v597 = vpop.f32.mrf.mxu0
    %v598 = vadd.f32 %v533, %v597
    %v599 = vpop.f32.mrf.mxu0
    %v600 = vadd.f32 %v533, %v599
    %601 = vmatmul.bf16.gmra.mxu0 %v513
    %v602 = vpop.f32.mrf.mxu0
    %v603 = vadd.f32 %v533, %v602
    %v604 = vpop.f32.mrf.mxu0
    %v605 = vadd.f32 %v533, %v604
    %606 = vmatmul.bf16.gmra.mxu0 %v514
    %v607 = vpop.f32.mrf.mxu0
    %v608 = vadd.f32 %v533, %v607
    %v609 = vpop.f32.mrf.mxu0
    %v610 = vadd.f32 %v533, %v609
    %611 = vdwg.mxu0
    %612 = vmax.xlane.f32.xlu0 %v593
    %v613 = vpop.xlane.xlu0 %612
    %614 = vmax.xlane.f32.xlu0 %v595
    %v615 = vpop.xlane.xlu0 %614
    %616 = vmax.xlane.f32.xlu0 %v598
    %v617 = vpop.xlane.xlu0 %616
    %618 = vmax.xlane.f32.xlu0 %v600
    %v619 = vpop.xlane.xlu0 %618
    %620 = vmax.xlane.f32.xlu0 %v603
    %v621 = vpop.xlane.xlu0 %620
    %622 = vmax.xlane.f32.xlu0 %v605
    %v623 = vpop.xlane.xlu0 %622
    %624 = vmax.xlane.f32.xlu0 %v608
    %v625 = vpop.xlane.xlu0 %624
    %626 = vmax.xlane.f32.xlu0 %v610
    %v627 = vpop.xlane.xlu0 %626
    %v628 = vsub.f32 %v593, %v613
    %v629 = vsub.f32 %v595, %v615
    %v630 = vsub.f32 %v598, %v617
    %v631 = vsub.f32 %v600, %v619
    %v632 = vsub.f32 %v603, %v621
    %v633 = vsub.f32 %v605, %v623
    %v634 = vsub.f32 %v608, %v625
    %v635 = vsub.f32 %v610, %v627
    %v636 = vmul.f32 %v628, 1.442695
    %v637 = vpow.pop %v636
    %v638 = vmul.f32 %v629, 1.442695
    %v639 = vpow.pop %v638
    %v640 = vmul.f32 %v630, 1.442695
    %v641 = vpow.pop %v640
    %v642 = vmul.f32 %v631, 1.442695
    %v643 = vpow.pop %v642
    %v644 = vmul.f32 %v632, 1.442695
    %v645 = vpow.pop %v644
    %v646 = vmul.f32 %v633, 1.442695
    %v647 = vpow.pop %v646
    %v648 = vmul.f32 %v634, 1.442695
    %v649 = vpow.pop %v648
    %v650 = vmul.f32 %v635, 1.442695
    %v651 = vpow.pop %v650
    %652 = vadd.xlane.f32.xlu0 %v637
    %v653 = vpop.xlane.xlu0 %652
    %654 = vadd.xlane.f32.xlu0 %v639
    %v655 = vpop.xlane.xlu0 %654
    %656 = vadd.xlane.f32.xlu0 %v641
    %v657 = vpop.xlane.xlu0 %656
    %658 = vadd.xlane.f32.xlu0 %v643
    %v659 = vpop.xlane.xlu0 %658
    %660 = vadd.xlane.f32.xlu0 %v645
    %v661 = vpop.xlane.xlu0 %660
    %662 = vadd.xlane.f32.xlu0 %v647
    %v663 = vpop.xlane.xlu0 %662
    %664 = vadd.xlane.f32.xlu0 %v649
    %v665 = vpop.xlane.xlu0 %664
    %666 = vadd.xlane.f32.xlu0 %v651
    %v667 = vpop.xlane.xlu0 %666
    %v668 = vrcp.pop %v653
    %v669 = vmul.f32 %v653, %v668
    %v670 = vsub.f32 1.0, %v669
    %v671 = vmul.f32 %v668, %v670
    %v672 = vadd.f32 %v668, %v671
    %vm673 = vweird.f32 %v653
    %vm674 = vweird.f32 %v668
    %vm675 = vmor %vm673, %vm674
    %v676 = vsel %vm675, %v668, %v672
    %v677 = vand.u32 2147483647, %v653
    %vm678 = vcmp.eq.f32.partialorder %v677, 8.507059e+37
    %v679 = vand.u32 %v653, 2147483648
    %v680 = vor.u32 1.1754944e-38, %v679
    %v681 = vsel %vm678, %v680, %v676
    %v682 = vmul.f32 %v637, %v681
    %v683 = vrcp.pop %v655
    %v684 = vmul.f32 %v655, %v683
    %v685 = vsub.f32 1.0, %v684
    %v686 = vmul.f32 %v683, %v685
    %v687 = vadd.f32 %v683, %v686
    %vm688 = vweird.f32 %v655
    %vm689 = vweird.f32 %v683
    %vm690 = vmor %vm688, %vm689
    %v691 = vsel %vm690, %v683, %v687
    %v692 = vand.u32 2147483647, %v655
    %vm693 = vcmp.eq.f32.partialorder %v692, 8.507059e+37
    %v694 = vand.u32 %v655, 2147483648
    %v695 = vor.u32 1.1754944e-38, %v694
    %v696 = vsel %vm693, %v695, %v691
    %v697 = vmul.f32 %v639, %v696
    %v698 = vrcp.pop %v657
    %v699 = vmul.f32 %v657, %v698
    %v700 = vsub.f32 1.0, %v699
    %v701 = vmul.f32 %v698, %v700
    %v702 = vadd.f32 %v698, %v701
    %vm703 = vweird.f32 %v657
    %vm704 = vweird.f32 %v698
    %vm705 = vmor %vm703, %vm704
    %v706 = vsel %vm705, %v698, %v702
    %v707 = vand.u32 2147483647, %v657
    %vm708 = vcmp.eq.f32.partialorder %v707, 8.507059e+37
    %v709 = vand.u32 %v657, 2147483648
    %v710 = vor.u32 1.1754944e-38, %v709
    %v711 = vsel %vm708, %v710, %v706
    %v712 = vmul.f32 %v641, %v711
    %v713 = vrcp.pop %v659
    %v714 = vmul.f32 %v659, %v713
    %v715 = vsub.f32 1.0, %v714
    %v716 = vmul.f32 %v713, %v715
    %v717 = vadd.f32 %v713, %v716
    %vm718 = vweird.f32 %v659
    %vm719 = vweird.f32 %v713
    %vm720 = vmor %vm718, %vm719
    %v721 = vsel %vm720, %v713, %v717
    %v722 = vand.u32 2147483647, %v659
    %vm723 = vcmp.eq.f32.partialorder %v722, 8.507059e+37
    %v724 = vand.u32 %v659, 2147483648
    %v725 = vor.u32 1.1754944e-38, %v724
    %v726 = vsel %vm723, %v725, %v721
    %v727 = vmul.f32 %v643, %v726
    %v728 = vrcp.pop %v661
    %v729 = vmul.f32 %v661, %v728
    %v730 = vsub.f32 1.0, %v729
    %v731 = vmul.f32 %v728, %v730
    %v732 = vadd.f32 %v728, %v731
    %vm733 = vweird.f32 %v661
    %vm734 = vweird.f32 %v728
    %vm735 = vmor %vm733, %vm734
    %v736 = vsel %vm735, %v728, %v732
    %v737 = vand.u32 2147483647, %v661
    %vm738 = vcmp.eq.f32.partialorder %v737, 8.507059e+37
    %v739 = vand.u32 %v661, 2147483648
    %v740 = vor.u32 1.1754944e-38, %v739
    %v741 = vsel %vm738, %v740, %v736
    %v742 = vmul.f32 %v645, %v741
    %v743 = vrcp.pop %v663
    %v744 = vmul.f32 %v663, %v743
    %v745 = vsub.f32 1.0, %v744
    %v746 = vmul.f32 %v743, %v745
    %v747 = vadd.f32 %v743, %v746
    %vm748 = vweird.f32 %v663
    %vm749 = vweird.f32 %v743
    %vm750 = vmor %vm748, %vm749
    %v751 = vsel %vm750, %v743, %v747
    %v752 = vand.u32 2147483647, %v663
    %vm753 = vcmp.eq.f32.partialorder %v752, 8.507059e+37
    %v754 = vand.u32 %v663, 2147483648
    %v755 = vor.u32 1.1754944e-38, %v754
    %v756 = vsel %vm753, %v755, %v751
    %v757 = vmul.f32 %v647, %v756
    %v758 = vrcp.pop %v665
    %v759 = vmul.f32 %v665, %v758
    %v760 = vsub.f32 1.0, %v759
    %v761 = vmul.f32 %v758, %v760
    %v762 = vadd.f32 %v758, %v761
    %vm763 = vweird.f32 %v665
    %vm764 = vweird.f32 %v758
    %vm765 = vmor %vm763, %vm764
    %v766 = vsel %vm765, %v758, %v762
    %v767 = vand.u32 2147483647, %v665
    %vm768 = vcmp.eq.f32.partialorder %v767, 8.507059e+37
    %v769 = vand.u32 %v665, 2147483648
    %v770 = vor.u32 1.1754944e-38, %v769
    %v771 = vsel %vm768, %v770, %v766
    %v772 = vmul.f32 %v649, %v771
    %v773 = vrcp.pop %v667
    %v774 = vmul.f32 %v667, %v773
    %v775 = vsub.f32 1.0, %v774
    %v776 = vmul.f32 %v773, %v775
    %v777 = vadd.f32 %v773, %v776
    %vm778 = vweird.f32 %v667
    %vm779 = vweird.f32 %v773
    %vm780 = vmor %vm778, %vm779
    %v781 = vsel %vm780, %v773, %v777
    %v782 = vand.u32 2147483647, %v667
    %vm783 = vcmp.eq.f32.partialorder %v782, 8.507059e+37
    %v784 = vand.u32 %v667, 2147483648
    %v785 = vor.u32 1.1754944e-38, %v784
    %v786 = vsel %vm783, %v785, %v781
    %v787 = vmul.f32 %v651, %v786
    %788 = vst [vmem:[%s10] sm:$0xff] %v682
    %789 = vst [vmem:[%s10 + $0x8] sm:$0xff] %v697
    %790 = vst [vmem:[%s10 + $0x10] sm:$0xff] %v712
    %791 = vst [vmem:[%s10 + $0x18] sm:$0xff] %v727
    %792 = vst [vmem:[%s10 + $0x20] sm:$0xff] %v742
    %793 = vst [vmem:[%s10 + $0x28] sm:$0xff] %v757
    %794 = vst [vmem:[%s10 + $0x30] sm:$0xff] %v772
    %795 = vst [vmem:[%s10 + $0x38] sm:$0xff] %v787
    %v796 = vlog2.pop %v653
    %v797 = vmul.f32 %v796, 0.6931472
    %v798 = vlog2.pop %v655
    %v799 = vmul.f32 %v798, 0.6931472
    %v800 = vlog2.pop %v657
    %v801 = vmul.f32 %v800, 0.6931472
    %v802 = vlog2.pop %v659
    %v803 = vmul.f32 %v802, 0.6931472
    %v804 = vlog2.pop %v661
    %v805 = vmul.f32 %v804, 0.6931472
    %v806 = vlog2.pop %v663
    %v807 = vmul.f32 %v806, 0.6931472
    %v808 = vlog2.pop %v665
    %v809 = vmul.f32 %v808, 0.6931472
    %v810 = vlog2.pop %v667
    %v811 = vmul.f32 %v810, 0.6931472
    %v812 = vsub.f32 %v628, %v797
    %v813 = vsub.f32 %v629, %v799
    %v814 = vsub.f32 %v630, %v801
    %v815 = vsub.f32 %v631, %v803
    %v816 = vsub.f32 %v632, %v805
    %v817 = vsub.f32 %v633, %v807
    %v818 = vsub.f32 %v634, %v809
    %v819 = vsub.f32 %v635, %v811
    %820 = vst [vmem:[%s9] sm:$0xff] %v812
    %821 = vst [vmem:[%s9 + $0x8] sm:$0xff] %v813
    %822 = vst [vmem:[%s9 + $0x10] sm:$0xff] %v814
    %823 = vst [vmem:[%s9 + $0x18] sm:$0xff] %v815
    %824 = vst [vmem:[%s9 + $0x20] sm:$0xff] %v816
    %825 = vst [vmem:[%s9 + $0x28] sm:$0xff] %v817
    %826 = vst [vmem:[%s9 + $0x30] sm:$0xff] %v818
    %827 = vst [vmem:[%s9 + $0x38] sm:$0xff] %v819
    %v828 = vmul.f32 %v503, %v503
    %v829 = vmul.f32 %v504, %v504
    %v830 = vmul.f32 %v505, %v505
    %v831 = vmul.f32 %v506, %v506
    %v832 = vmul.f32 %v507, %v507
    %v833 = vmul.f32 %v508, %v508
    %v834 = vmul.f32 %v509, %v509
    %v835 = vmul.f32 %v510, %v510
    %836 = vadd.xlane.f32.xlu0 %v828
    %v837 = vpop.xlane.xlu0 %836
    %838 = vadd.xlane.f32.xlu0 %v829
    %v839 = vpop.xlane.xlu0 %838
    %840 = vadd.xlane.f32.xlu0 %v830
    %v841 = vpop.xlane.xlu0 %840
    %842 = vadd.xlane.f32.xlu0 %v831
    %v843 = vpop.xlane.xlu0 %842
    %844 = vadd.xlane.f32.xlu0 %v832
    %v845 = vpop.xlane.xlu0 %844
    %846 = vadd.xlane.f32.xlu0 %v833
    %v847 = vpop.xlane.xlu0 %846
    %848 = vadd.xlane.f32.xlu0 %v834
    %v849 = vpop.xlane.xlu0 %848
    %850 = vadd.xlane.f32.xlu0 %v835
    %v851 = vpop.xlane.xlu0 %850
    %v852 = vmax.f32 %v837, 1e-24
    %v853 = vmax.f32 %v839, 1e-24
    %v854 = vmax.f32 %v841, 1e-24
    %v855 = vmax.f32 %v843, 1e-24
    %v856 = vmax.f32 %v845, 1e-24
    %v857 = vmax.f32 %v847, 1e-24
    %v858 = vmax.f32 %v849, 1e-24
    %v859 = vmax.f32 %v851, 1e-24
    %v860 = vrsqrt.pop %v852
    %v861 = vmul.f32 %v860, %v852
    %v862 = vmul.f32 %v861, %v860
    %v863 = vmul.f32 0.5, %v862
    %v864 = vsub.f32 1.5, %v863
    %v865 = vmul.f32 %v860, %v864
    %vm866 = vweird.f32 %v852
    %vm867 = vweird.f32 %v860
    %vm868 = vmor %vm866, %vm867
    %v869 = vsel %vm868, %v860, %v865
    %v870 = vrsqrt.pop %v853
    %v871 = vmul.f32 %v870, %v853
    %v872 = vmul.f32 %v871, %v870
    %v873 = vmul.f32 0.5, %v872
    %v874 = vsub.f32 1.5, %v873
    %v875 = vmul.f32 %v870, %v874
    %vm876 = vweird.f32 %v853
    %vm877 = vweird.f32 %v870
    %vm878 = vmor %vm876, %vm877
    %v879 = vsel %vm878, %v870, %v875
    %v880 = vrsqrt.pop %v854
    %v881 = vmul.f32 %v880, %v854
    %v882 = vmul.f32 %v881, %v880
    %v883 = vmul.f32 0.5, %v882
    %v884 = vsub.f32 1.5, %v883
    %v885 = vmul.f32 %v880, %v884
    %vm886 = vweird.f32 %v854
    %vm887 = vweird.f32 %v880
    %vm888 = vmor %vm886, %vm887
    %v889 = vsel %vm888, %v880, %v885
    %v890 = vrsqrt.pop %v855
    %v891 = vmul.f32 %v890, %v855
    %v892 = vmul.f32 %v891, %v890
    %v893 = vmul.f32 0.5, %v892
    %v894 = vsub.f32 1.5, %v893
    %v895 = vmul.f32 %v890, %v894
    %vm896 = vweird.f32 %v855
    %vm897 = vweird.f32 %v890
    %vm898 = vmor %vm896, %vm897
    %v899 = vsel %vm898, %v890, %v895
    %v900 = vrsqrt.pop %v856
    %v901 = vmul.f32 %v900, %v856
    %v902 = vmul.f32 %v901, %v900
    %v903 = vmul.f32 0.5, %v902
    %v904 = vsub.f32 1.5, %v903
    %v905 = vmul.f32 %v900, %v904
    %vm906 = vweird.f32 %v856
    %vm907 = vweird.f32 %v900
    %vm908 = vmor %vm906, %vm907
    %v909 = vsel %vm908, %v900, %v905
    %v910 = vrsqrt.pop %v857
    %v911 = vmul.f32 %v910, %v857
    %v912 = vmul.f32 %v911, %v910
    %v913 = vmul.f32 0.5, %v912
    %v914 = vsub.f32 1.5, %v913
    %v915 = vmul.f32 %v910, %v914
    %vm916 = vweird.f32 %v857
    %vm917 = vweird.f32 %v910
    %vm918 = vmor %vm916, %vm917
    %v919 = vsel %vm918, %v910, %v915
    %v920 = vrsqrt.pop %v858
    %v921 = vmul.f32 %v920, %v858
    %v922 = vmul.f32 %v921, %v920
    %v923 = vmul.f32 0.5, %v922
    %v924 = vsub.f32 1.5, %v923
    %v925 = vmul.f32 %v920, %v924
    %vm926 = vweird.f32 %v858
    %vm927 = vweird.f32 %v920
    %vm928 = vmor %vm926, %vm927
    %v929 = vsel %vm928, %v920, %v925
    %v930 = vrsqrt.pop %v859
    %v931 = vmul.f32 %v930, %v859
    %v932 = vmul.f32 %v931, %v930
    %v933 = vmul.f32 0.5, %v932
    %v934 = vsub.f32 1.5, %v933
    %v935 = vmul.f32 %v930, %v934
    %vm936 = vweird.f32 %v859
    %vm937 = vweird.f32 %v930
    %vm938 = vmor %vm936, %vm937
    %v939 = vsel %vm938, %v930, %v935
    %v940 = vmul.f32 %v503, %v869
    %v941 = vmul.f32 %v504, %v879
    %v942 = vmul.f32 %v505, %v889
    %v943 = vmul.f32 %v506, %v899
    %v944 = vmul.f32 %v507, %v909
    %v945 = vmul.f32 %v508, %v919
    %v946 = vmul.f32 %v509, %v929
    %v947 = vmul.f32 %v510, %v939
    %948 = vst [vmem:[#allocation2] sm:$0xff] %v940
    %949 = vst [vmem:[#allocation2 + $0x8] sm:$0xff] %v941
    %950 = vst [vmem:[#allocation2 + $0x10] sm:$0xff] %v942
    %951 = vst [vmem:[#allocation2 + $0x18] sm:$0xff] %v943
    %952 = vst [vmem:[#allocation2 + $0x20] sm:$0xff] %v944
    %953 = vst [vmem:[#allocation2 + $0x28] sm:$0xff] %v945
    %954 = vst [vmem:[#allocation2 + $0x30] sm:$0xff] %v946
    %955 = vst [vmem:[#allocation2 + $0x38] sm:$0xff] %v947
    // Predicated region
    $region34: #{balance_theory_forward.1} parent=1 // pred_check
      _
    $region35: #{balance_theory_forward.1} parent=1 // pred_check_branch
      %957 = sbr.rel (0) target = $region37
    $region36: #{balance_theory_forward.1} parent=1 // pred_region
      %959 = vsyncadd [#allocation3], 0
      %s960 = sshll.u32 [#allocation2], 4
      %s961 = int_to_ptr.vmem [resolvable:$true] %s960
      %s962 = sshll.u32 %s8, 4
      %s963 = int_to_ptr.hbm [resolvable:$true] %s962
      %968 = dma.vmem_to_hbm [thread:$0]  %s961, 1024, %s963, [#allocation3], 128, 128, 8
    $region37: #{balance_theory_forward.1} parent=1 // pred_fallthru
      _
    // Predicated region
    $region38: #{balance_theory_forward.1} parent=1 // pred_check
      _
    $region39: #{balance_theory_forward.1} parent=1 // pred_check_branch
      %970 = sbr.rel (0) target = $region41
    $region40: #{balance_theory_forward.1} parent=1 // pred_region
      _
    $region41: #{balance_theory_forward.1} parent=1 // pred_fallthru
      _
    // Predicated region
    $region42: #{balance_theory_forward.1} parent=1 // pred_check
      _
    $region43: #{balance_theory_forward.1} parent=1 // pred_check_branch
      %972 = sbr.rel (0) target = $region45
    $region44: #{balance_theory_forward.1} parent=1 // pred_region
      _
    $region45: #{balance_theory_forward.1} parent=1 // pred_fallthru
      _
    // Predicated region
    $region46: #{balance_theory_forward.1} parent=1 // pred_check
      _
    $region47: #{balance_theory_forward.1} parent=1 // pred_check_branch
      %974 = sbr.rel (0) target = $region49
    $region48: #{balance_theory_forward.1} parent=1 // pred_region
      %976 = dma.done [#allocation3], 1024
    $region49: #{balance_theory_forward.1} parent=1 // pred_fallthru
      _
    // Predicated region
    $region50: #{balance_theory_forward.1} parent=1 // pred_check
      _
    $region51: #{balance_theory_forward.1} parent=1 // pred_check_branch
      %978 = sbr.rel (0) target = $region53
    $region52: #{balance_theory_forward.1} parent=1 // pred_region
      _
    $region53: #{balance_theory_forward.1} parent=1 // pred_fallthru
      _
    // Predicated region
    $region54: #{balance_theory_forward.1} parent=1 // pred_check
      _
    $region55: #{balance_theory_forward.1} parent=1 // pred_check_branch
      %980 = sbr.rel (0) target = $region57
    $region56: #{balance_theory_forward.1} parent=1 // pred_region
      _
    $region57: #{balance_theory_forward.1} parent=1 // pred_fallthru
      _
    %981 = vsyncpa [#allocation3], 1

</llo_original>
